<compile_context>
chip_gen: v7x
topology: tpu7x:2x2x1
jax: 0.10.0
libtpu: 0.0.40
codegen_flags: <defaults>
</compile_context>

<pallas_src>
import functools

import jax
import jax.numpy as jnp
from jax.experimental import pallas as pl
from jax.experimental.pallas import tpu as pltpu

DROP_OUT = 0.1

# ~1 MiB per f32 buffer / 512 KiB per bf16 buffer.
_TARGET_TILE_ELEMS = 256 * 1024


def _largest_divisor(n, unit, cap):
    """Largest d with n % d == 0, d % unit == 0, d <= cap (None if impossible)."""
    if n % unit != 0:
        return None
    d = (min(n, cap) // unit) * unit
    while d >= unit:
        if n % d == 0:
            return d
        d -= unit
    return None


def _posenc_kernel(seed_ref, x_ref, pos_ref, o_ref, *, p, training, sd_total, tb, tc):
    # Elementwise add; pos_ref is (1, tc) and broadcasts over the batch rows.
    # Compute in the native dtype (bf16 VALU on v6e/v7x; f32 inputs stay f32).
    y = x_ref[...] + pos_ref[...]

    if training and p > 0.0:
        if p >= 1.0:
            y = jnp.zeros_like(y)
        else:
            # Global element index -> unique, tile-independent dropout mask.
            row = jax.lax.broadcasted_iota(jnp.uint32, (tb, tc), 0)
            col = jax.lax.broadcasted_iota(jnp.uint32, (tb, tc), 1)
            row_off = (pl.program_id(0) * tb).astype(jnp.uint32)
            col_off = (pl.program_id(1) * tc).astype(jnp.uint32)
            ctr = (row + row_off) * jnp.uint32(sd_total) + (col + col_off)

            # splitmix32 / lowbias32 finalizer mixed with the runtime seed.
            h = ctr ^ (seed_ref[0].astype(jnp.uint32) * jnp.uint32(0x9E3779B9))
            h = (h ^ (h >> 16)) * jnp.uint32(0x7FEB352D)
            h = (h ^ (h >> 15)) * jnp.uint32(0x846CA68B)
            h = h ^ (h >> 16)

            threshold = jnp.uint32(min(int(p * (2 ** 32)), 2 ** 32 - 1))
            keep = h >= threshold
            scale = jnp.asarray(1.0 / (1.0 - p), dtype=y.dtype)
            y = jnp.where(keep, y * scale, jnp.zeros_like(y))

    o_ref[...] = y.astype(o_ref.dtype)


def positional_encoder(x, pos_embed, *, p=DROP_OUT, training=False, seed=0):
    """x: (B, S, D), pos_embed: (1, S, D). Returns (B, S, D)."""
    B, S, D = x.shape
    assert pos_embed.shape == (1, S, D)
    SD = S * D

    # Lane-dense 2D views (free reshapes in the wrapper).
    x2 = x.reshape(B, SD)
    pos2 = pos_embed.astype(x.dtype).reshape(1, SD)

    # Column tile: largest 128-multiple divisor of S*D up to the target size
    # (falls back to the full extent if S*D isn't a multiple of 128).
    tC = _largest_divisor(SD, 128, _TARGET_TILE_ELEMS) or SD
    # Batch tile: multiple of 8 divisor of B sized to the remaining budget;
    # if B isn't a multiple of 8 we must use the full batch extent.
    cap_b = max(8, _TARGET_TILE_ELEMS // tC)
    tB = _largest_divisor(B, 8, cap_b)
    if tB is None:
        tB = B

    grid = (B // tB, SD // tC)

    kernel = functools.partial(
        _posenc_kernel,
        p=float(p),
        training=bool(training),
        sd_total=SD,
        tb=tB,
        tc=tC,
    )
    seed_arr = jnp.asarray([seed], dtype=jnp.int32)

    itemsize = x.dtype.itemsize
    cost = pl.CostEstimate(
        flops=B * SD,
        transcendentals=0,
        bytes_accessed=2 * B * SD * itemsize + SD * itemsize,
    )

    out2 = pl.pallas_call(
        kernel,
        out_shape=jax.ShapeDtypeStruct((B, SD), x.dtype),
        grid_spec=pltpu.PrefetchScalarGridSpec(
            num_scalar_prefetch=1,
            grid=grid,
            in_specs=[
                pl.BlockSpec((tB, tC), lambda b, c, seed: (b, c)),   # x tile
                pl.BlockSpec((1, tC), lambda b, c, seed: (0, c)),    # pos tile (bcast over B)
            ],
            out_specs=pl.BlockSpec((tB, tC), lambda b, c, seed: (b, c)),
        ),
        compiler_params=pltpu.CompilerParams(
            dimension_semantics=("parallel", "parallel"),
            vmem_limit_bytes=32 * 1024 * 1024,
        ),
        cost_estimate=cost,
    )(seed_arr, x2, pos2)

    return out2.reshape(B, S, D)


if __name__ == "__main__":
    # Small shapes consistent with the module: batch=2, seq_len=8, d_model=32.
    B, S, D = 2, 8, 32
    key = jax.random.PRNGKey(0)
    kx, kp = jax.random.split(key)

    x = jax.random.normal(kx, (B, S, D), dtype=jnp.float32)
    # deterministic "torch.randn(1, seq_len, d_model)" analogue
    pos_embed = jax.random.normal(kp, (1, S, D), dtype=jnp.float32)

    # eval mode (dropout is identity) — must match x + pos_embed exactly
    out_eval = positional_encoder(x, pos_embed, training=False)
    out_eval = jax.block_until_ready(out_eval)
    ref = x + pos_embed
    assert out_eval.shape == (B, S, D)
    assert out_eval.dtype == x.dtype
    assert jnp.allclose(out_eval, ref, atol=1e-6), "eval-mode mismatch"

    # train mode — every element must be either dropped (0) or scaled by 1/(1-p)
    out_train = positional_encoder(x, pos_embed, training=True, seed=123)
    out_train = jax.block_until_ready(out_train)
    assert out_train.shape == (B, S, D)
    assert out_train.dtype == x.dtype
    scaled = ref / (1.0 - DROP_OUT)
    ok = jnp.isclose(out_train, 0.0) | jnp.isclose(out_train, scaled, atol=1e-5)
    assert bool(jnp.all(ok)), "train-mode dropout values inconsistent"

    print("KERNEL_OK")
</pallas_src>

<mosaic_0001>
module attributes {stable_mosaic.version = 11 : i64} {
  func.func @_posenc_kernel(%arg0: i32, %arg1: i32, %arg2: memref<1xi32, #tpu.memory_space<smem>>, %arg3: memref<2x256xf32, #tpu.memory_space<vmem>>, %arg4: memref<1x256xf32, #tpu.memory_space<vmem>>, %arg5: memref<2x256xf32, #tpu.memory_space<vmem>>) attributes {dimension_semantics = [#tpu.dimension_semantics<parallel>, #tpu.dimension_semantics<parallel>], iteration_bounds = array<i64: 1, 1>, scalar_prefetch = 1 : i64, scratch_operands = 0 : i64, tpu.core_type = #tpu.core_type<tc>, window_params = [{transform_indices = @transform_0, window_bounds = array<i64: 2, 256>}, {transform_indices = @transform_1, window_bounds = array<i64: 1, 256>}, {transform_indices = @transform_2, window_bounds = array<i64: 2, 256>}]} {
    %c0 = arith.constant 0 : index
    %c0_0 = arith.constant 0 : index
    %0 = vector.load %arg3[%c0, %c0_0] : memref<2x256xf32, #tpu.memory_space<vmem>>, vector<2x256xf32>
    %c0_1 = arith.constant 0 : index
    %c0_2 = arith.constant 0 : index
    %1 = vector.load %arg4[%c0_1, %c0_2] : memref<1x256xf32, #tpu.memory_space<vmem>>, vector<1x256xf32>
    %2 = vector.broadcast %1 : vector<1x256xf32> to vector<2x256xf32>
    %3 = arith.addf %0, %2 : vector<2x256xf32>
    %c0_3 = arith.constant 0 : index
    %c0_4 = arith.constant 0 : index
    %4 = vector.load %arg5[%c0_3, %c0_4] : memref<2x256xf32, #tpu.memory_space<vmem>>, vector<2x256xf32>
    tpu.vector_store %arg5[%c0_3, %c0_4], %3 {strides = array<i32>} : memref<2x256xf32, #tpu.memory_space<vmem>>, vector<2x256xf32>,
    return
  }
  func.func @transform_0(%arg0: i32, %arg1: i32, %arg2: memref<1xi32, #tpu.memory_space<smem>>) -> (i32, i32) {
    %c0_i32 = arith.constant 0 : i32
    return %arg0, %arg1 : i32, i32
  }
  func.func @transform_1(%arg0: i32, %arg1: i32, %arg2: memref<1xi32, #tpu.memory_space<smem>>) -> (i32, i32) {
    %c0_i32 = arith.constant 0 : i32
    %c0_i32_0 = arith.constant 0 : i32
    return %c0_i32, %arg1 : i32, i32
  }
  func.func @transform_2(%arg0: i32, %arg1: i32, %arg2: memref<1xi32, #tpu.memory_space<smem>>) -> (i32, i32) {
    %c0_i32 = arith.constant 0 : i32
    return %arg0, %arg1 : i32, i32
  }
}

</mosaic_0001>

<llo_original>
// kernel: tpu_custom_call.1
$region0: #{tpu_custom_call.1}
  #allocation0 [shape = 'u32[]', space=smem, size = 0x4, offset = 0x4, fixed_abs, tag = 'smem constant byte address 0x4 - core index']
  #allocation1 [shape = 'u32[144,128]{1,0:T(1,128)}', space=vmem, size = 0x12000, scoped, tag = 'internal scratch']
  #allocation2 [shape = 's32[1]{0}', space=sflag, size = 0x4, scoped, tag = 'scoped memory for tpu_custom_call.1']
  #allocation3 [shape = 's32[1]{0:T(128)S(6)}', space=smem, size = 0x200, scoped, tag = 'prefetched SMEM operand 0']
  %s0 = inlined_call_operand.<no memory space> [shape: s32[1], index: 0, kind: input, shape index: {}]
  %s1 = inlined_call_operand.hbm [shape: f32[2,256], index: 1, kind: input, shape index: {}]
  %s2 = inlined_call_operand.vmem [shape: f32[1,256], index: 2, kind: input, shape index: {}]
  %s3 = inlined_call_operand.hbm [shape: f32[2,256], index: 3, kind: output, shape index: {}]
  %s4 = sld [smem:[#allocation0]]
  $region22: #{tpu_custom_call.1} parent=0
    _
  %s6 = ssub.s32 1, %s4
  %s7 = scalar_select 0, %s6, %s4
  %8 = sst [smem:[#allocation3]] %s0
  $region1: #{tpu_custom_call.1} parent=0
    #allocation4 [shape = 'u8[2048]{0}', space=vmem, size = 0x800, scoped, tag = 'input window, operand 1, single buffered']
    #allocation5 [shape = 's32[1]{0}', space=sflag, size = 0x4, scoped, tag = 'scoped memory for tpu_custom_call.1']
    #allocation6 [shape = 's32[1]{0}', space=sflag, size = 0x4, scoped, tag = 'scoped memory for tpu_custom_call.1']
    #allocation7 [shape = 'u8[2048]{0}', space=vmem, size = 0x800, scoped, tag = 'output window, operand 0, single buffered']
    %9 = vsyncpa [#allocation5], 0
    %10 = vsyncpa [#allocation6], 0
    // Predicated region
    $region2: #{tpu_custom_call.1} parent=1 // pred_check
      _
    $region3: #{tpu_custom_call.1} parent=1 // pred_check_branch
      %12 = sbr.rel (0) target = $region5
    $region4: #{tpu_custom_call.1} parent=1 // pred_region
      %s14 = ssub.s32 64, 64
      %15 = vsyncadd [#allocation5], %s14
      %s17 = sshll.u32 [#allocation4], 4
      %s18 = int_to_ptr.vmem [resolvable:$true] %s17
      %20 = dma.hbm_to_vmem [thread:$0]  %s1, 64, %s18, [#allocation5]
    $region5: #{tpu_custom_call.1} parent=1 // pred_fallthru
      _
    // Predicated region
    $region6: #{tpu_custom_call.1} parent=1 // pred_check
      _
    $region7: #{tpu_custom_call.1} parent=1 // pred_check_branch
      %22 = sbr.rel (0) target = $region9
    $region8: #{tpu_custom_call.1} parent=1 // pred_region
      _
    $region9: #{tpu_custom_call.1} parent=1 // pred_fallthru
      _
    // Predicated region
    $region10: #{tpu_custom_call.1} parent=1 // pred_check
      _
    $region11: #{tpu_custom_call.1} parent=1 // pred_check_branch
      %24 = sbr.rel (0) target = $region13
    $region12: #{tpu_custom_call.1} parent=1 // pred_region
      %25 = dma.done [#allocation5], 64
    $region13: #{tpu_custom_call.1} parent=1 // pred_fallthru
      _
    %v26 = vld [vmem:[#allocation4] sm:$0xf]
    %v27 = vld [vmem:[%s2] sm:$0x3]
    %v29 = vlaneseq
    %v30 = vshrl.u32 %v29, 7
    %v31 = vsub.s32 0, %v30
    %v32 = vrot.slane %v27, %v31
    %v33 = vlaneseq
    %v34 = vshrl.u32 %v33, 7
    %v35 = vsub.s32 1, %v34
    %v36 = vrot.slane %v27, %v35
    %v37 = vcombine.low %v32, %v36
    %v39 = vunpack.c.l.s4 1983009808
    %v40 = vunpack.c.0.s8 %v39
    %v41 = vlaneseq
    %v42 = vshrl.u32 %v41, 7
    %v43 = vsub.s32 %v40, %v42
    %v44 = vrot.slane %v37, %v43
    %v46 = vadd.f32 %v26, %v44
    %47 = vst [vmem:[#allocation7] sm:$0xf] %v46
    // Predicated region
    $region14: #{tpu_custom_call.1} parent=1 // pred_check
      _
    $region15: #{tpu_custom_call.1} parent=1 // pred_check_branch
      %49 = sbr.rel (0) target = $region17
    $region16: #{tpu_custom_call.1} parent=1 // pred_region
      %s51 = ssub.s32 64, 64
      %52 = vsyncadd [#allocation6], %s51
      %s54 = sshll.u32 [#allocation7], 4
      %s55 = int_to_ptr.vmem [resolvable:$true] %s54
      %57 = dma.vmem_to_hbm [thread:$0]  %s55, 64, %s3, [#allocation6]
    $region17: #{tpu_custom_call.1} parent=1 // pred_fallthru
      _
    // Predicated region
    $region18: #{tpu_custom_call.1} parent=1 // pred_check
      _
    $region19: #{tpu_custom_call.1} parent=1 // pred_check_branch
      %59 = sbr.rel (0) target = $region21
    $region20: #{tpu_custom_call.1} parent=1 // pred_region
      %60 = dma.done [#allocation6], 64
    $region21: #{tpu_custom_call.1} parent=1 // pred_fallthru
      _
    %61 = vsyncpa [#allocation5], 1
    %62 = vsyncpa [#allocation6], 1

</llo_original>
